<compile_context>
chip_gen: v7x
topology: tpu7x:2x2x1
jax: 0.10.0
libtpu: 0.0.40
codegen_flags: <defaults>
</compile_context>

<pallas_src>
import functools

import jax
import jax.numpy as jnp
from jax import lax
from jax.experimental import pallas as pl
from jax.experimental.pallas import tpu as pltpu

_LANE = 128
_CHUNK_ROWS = 256            # rows per in-register accumulation sub-chunk
_MAX_BLOCK_BYTES = 4 << 20   # ~4 MiB per input per grid step (x3 inputs x2 bufs)
_ACC_ROWS = 32               # (32, 128) f32 accumulator = 4 vregs (VALU ILP)
_SMALL_MAX_ROWS = 1024       # <= 512 KiB per input: single-step fast path


def _round_up(a, b):
    return (a + b - 1) // b * b


def _num_tensorcores():
    # split=2 only where there are two TensorCores (v7x); on single-core
    # chips (v5e/v6e) a split is pure overhead (serial loop + wasted block).
    try:
        kind = jax.devices()[0].device_kind.lower()
    except Exception:
        return 1
    return 2 if ("v7" in kind or "7x" in kind) else 1


# --------------------------------------------------------------------------
# Small-input fast path: one grid step, full arrays as a single block.
# --------------------------------------------------------------------------
def _proj_loss_single_kernel(old_ref, new_ref, orig_ref, out_ref):
    orig = orig_ref[...].astype(jnp.float32)
    x = old_ref[...].astype(jnp.float32) - orig   # old_attack_mid - original_mid
    y = new_ref[...].astype(jnp.float32) - orig   # new_mid        - original_mid
    num = jnp.sum(x * y, keepdims=True)           # (1, 1)
    den = jnp.sum(x * x, keepdims=True)           # (1, 1)
    out_ref[...] = num / den


# --------------------------------------------------------------------------
# Large-input path: 2-D grid (core_split, row_blocks).
# Per block: chunked in-register accumulation into (32, 128) partials, added
# into the resident output refs; ragged tail handled on a pl.when cold path.
# --------------------------------------------------------------------------
def _proj_loss_block_kernel(old_ref, new_ref, orig_ref,
                            num_out_ref, den_out_ref,
                            *, rows, block_rows, steps_per_split, any_ragged):
    c = pl.program_id(0)   # "parallel" axis (2 TCs on v7x, size 1 elsewhere)
    k = pl.program_id(1)   # "arbitrary" reduction axis over row blocks

    @pl.when(k == 0)
    def _():
        num_out_ref[...] = jnp.zeros_like(num_out_ref)
        den_out_ref[...] = jnp.zeros_like(den_out_ref)

    base = (c * steps_per_split + k) * block_rows
    n_chunks = block_rows // _CHUNK_ROWS

    def accumulate(masked):
        def chunk_body(i, carry):
            num_acc, den_acc = carry
            r0 = pl.multiple_of(i * _CHUNK_ROWS, _CHUNK_ROWS)
            orig = orig_ref[pl.ds(r0, _CHUNK_ROWS), :].astype(jnp.float32)
            x = old_ref[pl.ds(r0, _CHUNK_ROWS), :].astype(jnp.float32) - orig
            y = new_ref[pl.ds(r0, _CHUNK_ROWS), :].astype(jnp.float32) - orig
            prod = x * y
            sq = x * x
            if masked:
                # Mask rows past the logical end (ragged tail / clamped block).
                row_ids = base + r0 + lax.broadcasted_iota(
                    jnp.int32, (_CHUNK_ROWS, _LANE), 0)
                valid = row_ids < rows
                prod = jnp.where(valid, prod, 0.0)
                sq = jnp.where(valid, sq, 0.0)
            # Fold the chunk onto the (32, 128) partials: pure VPU vreg adds.
            prod = prod.reshape(_CHUNK_ROWS // _ACC_ROWS, _ACC_ROWS, _LANE)
            sq = sq.reshape(_CHUNK_ROWS // _ACC_ROWS, _ACC_ROWS, _LANE)
            return (num_acc + jnp.sum(prod, axis=0),
                    den_acc + jnp.sum(sq, axis=0))

        init = (jnp.zeros((_ACC_ROWS, _LANE), jnp.float32),
                jnp.zeros((_ACC_ROWS, _LANE), jnp.float32))
        num_p, den_p = lax.fori_loop(0, n_chunks, chunk_body, init)
        # Output block index is constant across k -> resident accumulator.
        num_out_ref[...] += num_p.reshape(1, _ACC_ROWS, _LANE)
        den_out_ref[...] += den_p.reshape(1, _ACC_ROWS, _LANE)

    if any_ragged:
        is_interior = base + block_rows <= rows

        @pl.when(is_interior)
        def _():
            accumulate(masked=False)

        @pl.when(jnp.logical_not(is_interior))
        def _():
            accumulate(masked=True)
    else:
        accumulate(masked=False)


# --------------------------------------------------------------------------
# Wrapper (matches Proj_Loss.forward).
# --------------------------------------------------------------------------
def proj_loss(old_attack_mid, new_mid, original_mid, coeff=None):
    # `coeff` is accepted for signature fidelity but unused in the PyTorch forward.
    del coeff
    out_dtype = old_attack_mid.dtype

    old = old_attack_mid.reshape(-1)
    new = new_mid.reshape(-1)
    orig = original_mid.reshape(-1)
    n = old.shape[0]

    # Pad only to the 128-lane multiple (needed for the 2-D lane-dense layout).
    # Zero padding is safe: padded (old-orig)=(new-orig)=0 contributes nothing.
    pad = (-n) % _LANE
    if pad:
        old = jnp.pad(old, (0, pad))
        new = jnp.pad(new, (0, pad))
        orig = jnp.pad(orig, (0, pad))
    rows = (n + pad) // _LANE

    old2 = old.reshape(rows, _LANE)
    new2 = new.reshape(rows, _LANE)
    orig2 = orig.reshape(rows, _LANE)

    if rows <= _SMALL_MAX_ROWS:
        # ---- small-input fast path: single step, no masking, no pl.when ----
        full_spec = pl.BlockSpec((rows, _LANE), lambda i: (0, 0))
        out = pl.pallas_call(
            _proj_loss_single_kernel,
            out_shape=jax.ShapeDtypeStruct((1, 1), jnp.float32),
            grid_spec=pltpu.PrefetchScalarGridSpec(
                num_scalar_prefetch=0,
                grid=(1,),
                in_specs=[full_spec, full_spec, full_spec],
                out_specs=pl.BlockSpec((1, 1), lambda i: (0, 0)),
            ),
            compiler_params=pltpu.CompilerParams(
                dimension_semantics=("arbitrary",)),
        )(old2, new2, orig2)
        return out.astype(out_dtype)

    # ---- large-input path: tiled streaming reduction ----
    itemsize = int(jnp.dtype(old2.dtype).itemsize)
    max_block_rows = max(
        _CHUNK_ROWS,
        (_MAX_BLOCK_BYTES // (_LANE * itemsize)) // _CHUNK_ROWS * _CHUNK_ROWS)
    block_rows = min(max_block_rows, _round_up(rows, _CHUNK_ROWS))
    total_blocks = (rows + block_rows - 1) // block_rows

    split = _num_tensorcores() if total_blocks > 1 else 1
    steps = (total_blocks + split - 1) // split
    any_ragged = (rows % block_rows != 0) or (split * steps != total_blocks)

    def in_map(c, k):
        blk = c * steps + k
        # Clamp overflow steps to a valid block; the in-kernel mask zeroes them.
        return (jnp.minimum(blk, total_blocks - 1), 0)

    in_spec = pl.BlockSpec((block_rows, _LANE), in_map)
    out_spec = pl.BlockSpec((1, _ACC_ROWS, _LANE), lambda c, k: (c, 0, 0))

    kernel = functools.partial(
        _proj_loss_block_kernel,
        rows=rows,
        block_rows=block_rows,
        steps_per_split=steps,
        any_ragged=any_ragged,
    )

    # 3 inputs x 2 pipeline buffers x block, plus a little headroom for the
    # tiny partial-sum outputs.  Raises v5e's 16 MiB default; well under v7x's
    # 64 MiB physical VMEM.
    vmem_limit = int(3 * 2 * block_rows * _LANE * itemsize + (4 << 20))

    # TODO(synk): if profiling shows both v7x TensorCores are not active with
    # plain "parallel", switch the leading axis to pltpu.CORE_PARALLEL.
    num_part, den_part = pl.pallas_call(
        kernel,
        out_shape=(
            jax.ShapeDtypeStruct((split, _ACC_ROWS, _LANE), jnp.float32),
            jax.ShapeDtypeStruct((split, _ACC_ROWS, _LANE), jnp.float32),
        ),
        grid_spec=pltpu.PrefetchScalarGridSpec(
            num_scalar_prefetch=0,
            grid=(split, steps),
            in_specs=[in_spec, in_spec, in_spec],
            out_specs=[out_spec, out_spec],
        ),
        compiler_params=pltpu.CompilerParams(
            dimension_semantics=("parallel", "arbitrary"),
            vmem_limit_bytes=vmem_limit),
    )(old2, new2, orig2)

    # Tiny final cross-lane reduce + divide in the wrapper.
    num = jnp.sum(num_part)
    den = jnp.sum(den_part)
    # Note: den == 0 (old_attack_mid == original_mid) yields inf/nan, matching
    # the PyTorch reference (division by a zero norm).
    return (num / den).reshape(1, 1).astype(out_dtype)


# --------------------------------------------------------------------------
# Reference & self-test
# --------------------------------------------------------------------------
def _proj_loss_ref(old_attack_mid, new_mid, original_mid):
    x = (old_attack_mid - original_mid).reshape(1, -1).astype(jnp.float32)
    y = (new_mid - original_mid).reshape(1, -1).astype(jnp.float32)
    xn = jnp.linalg.norm(x)
    return (y @ (x / xn).T) / xn


def _make_inputs(key, shape):
    k1, k2, k3 = jax.random.split(key, 3)
    original_mid = jax.random.normal(k1, shape, dtype=jnp.float32)
    old_attack_mid = original_mid + 0.1 * jax.random.normal(k2, shape, dtype=jnp.float32)
    new_mid = original_mid + 0.1 * jax.random.normal(k3, shape, dtype=jnp.float32)
    return old_attack_mid, new_mid, original_mid


if __name__ == "__main__":
    key = jax.random.PRNGKey(0)
    key_small, key_mid, key_big = jax.random.split(key, 3)
    coeff = 1.0  # unused by the forward pass

    # Primary case: NCHW mid-layer activations (small-input fast path).
    shape = (2, 4, 16, 16)
    old_attack_mid, new_mid, original_mid = _make_inputs(key_small, shape)
    out = jax.block_until_ready(proj_loss(old_attack_mid, new_mid, original_mid, coeff))
    ref = _proj_loss_ref(old_attack_mid, new_mid, original_mid)
    assert out.shape == (1, 1)
    assert jnp.allclose(out, ref, rtol=1e-4, atol=1e-6), (out, ref)

    # Mid-size ragged case: single tiled block with a masked tail.
    shape_mid = (7, 37, 32, 32)   # 265216 elements -> 2072 rows of 128
    om, nm, rm = _make_inputs(key_mid, shape_mid)
    out_mid = jax.block_until_ready(proj_loss(om, nm, rm, coeff))
    ref_mid = _proj_loss_ref(om, nm, rm)
    assert out_mid.shape == (1, 1)
    assert jnp.allclose(out_mid, ref_mid, rtol=1e-3, atol=1e-5), (out_mid, ref_mid)

    # Larger ragged case: multiple row blocks -> interior (unmasked) blocks,
    # resident-output accumulation across k, and a masked tail block.
    shape_big = (9, 64, 48, 48)   # 1,327,104 elements -> 10368 rows of 128
    ob, nb, rb = _make_inputs(key_big, shape_big)
    out_big = jax.block_until_ready(proj_loss(ob, nb, rb, coeff))
    ref_big = _proj_loss_ref(ob, nb, rb)
    assert out_big.shape == (1, 1)
    assert jnp.allclose(out_big, ref_big, rtol=1e-3, atol=1e-5), (out_big, ref_big)

    print("KERNEL_OK")
</pallas_src>

<mosaic_0001>
module attributes {stable_mosaic.version = 11 : i64} {
  func.func @_proj_loss_single_kernel(%arg0: i32, %arg1: memref<16x128xf32, #tpu.memory_space<vmem>>, %arg2: memref<16x128xf32, #tpu.memory_space<vmem>>, %arg3: memref<16x128xf32, #tpu.memory_space<vmem>>, %arg4: memref<1x1xf32, #tpu.memory_space<vmem>>) attributes {dimension_semantics = [#tpu.dimension_semantics<arbitrary>], iteration_bounds = array<i64: 1>, scalar_prefetch = 0 : i64, scratch_operands = 0 : i64, tpu.core_type = #tpu.core_type<tc>, window_params = [{pipeline_mode = #tpu.pipeline_mode<synchronous>, transform_indices = @transform_0, window_bounds = array<i64: 16, 128>}, {pipeline_mode = #tpu.pipeline_mode<synchronous>, transform_indices = @transform_1, window_bounds = array<i64: 16, 128>}, {pipeline_mode = #tpu.pipeline_mode<synchronous>, transform_indices = @transform_2, window_bounds = array<i64: 16, 128>}, {pipeline_mode = #tpu.pipeline_mode<synchronous>, transform_indices = @transform_3, window_bounds = array<i64: 1, 1>}]} {
    %c0 = arith.constant 0 : index
    %c0_0 = arith.constant 0 : index
    %0 = vector.load %arg3[%c0, %c0_0] : memref<16x128xf32, #tpu.memory_space<vmem>>, vector<16x128xf32>
    %c0_1 = arith.constant 0 : index
    %c0_2 = arith.constant 0 : index
    %1 = vector.load %arg1[%c0_1, %c0_2] : memref<16x128xf32, #tpu.memory_space<vmem>>, vector<16x128xf32>
    %2 = arith.subf %1, %0 : vector<16x128xf32>
    %c0_3 = arith.constant 0 : index
    %c0_4 = arith.constant 0 : index
    %3 = vector.load %arg2[%c0_3, %c0_4] : memref<16x128xf32, #tpu.memory_space<vmem>>, vector<16x128xf32>
    %4 = arith.subf %3, %0 : vector<16x128xf32>
    %5 = arith.mulf %2, %4 : vector<16x128xf32>
    %6 = vector.shape_cast %5 : vector<16x128xf32> to vector<1x16x128xf32>
    %cst = arith.constant dense<0.000000e+00> : vector<1xf32>
    %7 = vector.multi_reduction <add>, %6, %cst [1, 2] : vector<1x16x128xf32> to vector<1xf32>
    %8 = vector.shape_cast %7 : vector<1xf32> to vector<1x1x1xf32>
    %9 = vector.extract %8[0, 0, 0] : f32 from vector<1x1x1xf32>
    %10 = vector.broadcast %9 : f32 to vector<1x1xf32>
    %11 = arith.mulf %2, %2 : vector<16x128xf32>
    %12 = vector.shape_cast %11 : vector<16x128xf32> to vector<1x16x128xf32>
    %cst_5 = arith.constant dense<0.000000e+00> : vector<1xf32>
    %13 = vector.multi_reduction <add>, %12, %cst_5 [1, 2] : vector<1x16x128xf32> to vector<1xf32>
    %14 = vector.shape_cast %13 : vector<1xf32> to vector<1x1x1xf32>
    %15 = vector.extract %14[0, 0, 0] : f32 from vector<1x1x1xf32>
    %16 = vector.broadcast %15 : f32 to vector<1x1xf32>
    %17 = arith.divf %10, %16 : vector<1x1xf32>
    %c0_6 = arith.constant 0 : index
    %c0_7 = arith.constant 0 : index
    %18 = vector.load %arg4[%c0_6, %c0_7] : memref<1x1xf32, #tpu.memory_space<vmem>>, vector<1x1xf32>
    tpu.vector_store %arg4[%c0_6, %c0_7], %17 {strides = array<i32>} : memref<1x1xf32, #tpu.memory_space<vmem>>, vector<1x1xf32>,
    return
  }
  func.func @transform_0(%arg0: i32) -> (i32, i32) {
    %c0_i32 = arith.constant 0 : i32
    %c0_i32_0 = arith.constant 0 : i32
    %c0_i32_1 = arith.constant 0 : i32
    return %c0_i32, %c0_i32_0 : i32, i32
  }
  func.func @transform_1(%arg0: i32) -> (i32, i32) {
    %c0_i32 = arith.constant 0 : i32
    %c0_i32_0 = arith.constant 0 : i32
    %c0_i32_1 = arith.constant 0 : i32
    return %c0_i32, %c0_i32_0 : i32, i32
  }
  func.func @transform_2(%arg0: i32) -> (i32, i32) {
    %c0_i32 = arith.constant 0 : i32
    %c0_i32_0 = arith.constant 0 : i32
    %c0_i32_1 = arith.constant 0 : i32
    return %c0_i32, %c0_i32_0 : i32, i32
  }
  func.func @transform_3(%arg0: i32) -> (i32, i32) {
    %c0_i32 = arith.constant 0 : i32
    %c0_i32_0 = arith.constant 0 : i32
    %c0_i32_1 = arith.constant 0 : i32
    return %c0_i32, %c0_i32_0 : i32, i32
  }
}

</mosaic_0001>

<llo_original>
// kernel: tpu_custom_call.1
$region0: #{tpu_custom_call.1}
  #allocation0 [shape = 'u32[]', space=smem, size = 0x4, offset = 0x4, fixed_abs, tag = 'smem constant byte address 0x4 - core index']
  #allocation1 [shape = 'u32[144,128]{1,0:T(1,128)}', space=vmem, size = 0x12000, scoped, tag = 'internal scratch']
  %s0 = inlined_call_operand.hbm [shape: f32[16,128], index: 0, kind: input, shape index: {}]
  %s1 = inlined_call_operand.hbm [shape: f32[16,128], index: 1, kind: input, shape index: {}]
  %s2 = inlined_call_operand.hbm [shape: f32[16,128], index: 2, kind: input, shape index: {}]
  %s3 = inlined_call_operand.hbm [shape: f32[1,1], index: 3, kind: output, shape index: {}]
  %s4 = sld [smem:[#allocation0]]
  $region34: #{tpu_custom_call.1} parent=0
    _
  %s6 = ssub.s32 1, %s4
  %s7 = scalar_select 0, %s6, %s4
  $region1: #{tpu_custom_call.1} parent=0
    #allocation2 [shape = 'u8[8192]{0}', space=vmem, size = 0x2000, scoped, tag = 'input window, operand 0, single buffered']
    #allocation3 [shape = 's32[1]{0}', space=sflag, size = 0x4, scoped, tag = 'scoped memory for tpu_custom_call.1']
    #allocation4 [shape = 's32[1]{0}', space=sflag, size = 0x4, scoped, tag = 'scoped memory for tpu_custom_call.1']
    #allocation5 [shape = 'u8[8192]{0}', space=vmem, size = 0x2000, scoped, tag = 'input window, operand 1, single buffered']
    #allocation6 [shape = 's32[1]{0}', space=sflag, size = 0x4, scoped, tag = 'scoped memory for tpu_custom_call.1']
    #allocation7 [shape = 'u8[8192]{0}', space=vmem, size = 0x2000, scoped, tag = 'input window, operand 2, single buffered']
    #allocation8 [shape = 'u8[512]{0}', space=vmem, size = 0x400, scoped, tag = 'output window, operand 0, single buffered']
    %8 = vsyncpa [#allocation3], 0
    %9 = vsyncpa [#allocation6], 0
    %10 = vsyncpa [#allocation4], 0
    // Predicated region
    $region2: #{tpu_custom_call.1} parent=1 // pred_check
      _
    $region3: #{tpu_custom_call.1} parent=1 // pred_check_branch
      %12 = sbr.rel (0) target = $region5
    $region4: #{tpu_custom_call.1} parent=1 // pred_region
      %s14 = ssub.s32 256, 256
      %15 = vsyncadd [#allocation3], %s14
      %s16 = sshll.u32 [#allocation2], 4
      %s17 = int_to_ptr.vmem [resolvable:$true] %s16
      %22 = dma.hbm_to_vmem [thread:$0]  %s0, 256, %s17, [#allocation3], 128, 128, 8
    $region5: #{tpu_custom_call.1} parent=1 // pred_fallthru
      _
    // Predicated region
    $region6: #{tpu_custom_call.1} parent=1 // pred_check
      _
    $region7: #{tpu_custom_call.1} parent=1 // pred_check_branch
      %24 = sbr.rel (0) target = $region9
    $region8: #{tpu_custom_call.1} parent=1 // pred_region
      %s26 = ssub.s32 256, 256
      %27 = vsyncadd [#allocation6], %s26
      %s28 = sshll.u32 [#allocation5], 4
      %s29 = int_to_ptr.vmem [resolvable:$true] %s28
      %34 = dma.hbm_to_vmem [thread:$0]  %s1, 256, %s29, [#allocation6], 128, 128, 8
    $region9: #{tpu_custom_call.1} parent=1 // pred_fallthru
      _
    // Predicated region
    $region10: #{tpu_custom_call.1} parent=1 // pred_check
      _
    $region11: #{tpu_custom_call.1} parent=1 // pred_check_branch
      %36 = sbr.rel (0) target = $region13
    $region12: #{tpu_custom_call.1} parent=1 // pred_region
      %s38 = ssub.s32 256, 256
      %39 = vsyncadd [#allocation6], %s38
      %s40 = sshll.u32 [#allocation7], 4
      %s41 = int_to_ptr.vmem [resolvable:$true] %s40
      %46 = dma.hbm_to_vmem [thread:$0]  %s2, 256, %s41, [#allocation6], 128, 128, 8
    $region13: #{tpu_custom_call.1} parent=1 // pred_fallthru
      _
    // Predicated region
    $region14: #{tpu_custom_call.1} parent=1 // pred_check
      _
    $region15: #{tpu_custom_call.1} parent=1 // pred_check_branch
      %48 = sbr.rel (0) target = $region17
    $region16: #{tpu_custom_call.1} parent=1 // pred_region
      %49 = dma.done [#allocation3], 256
    $region17: #{tpu_custom_call.1} parent=1 // pred_fallthru
      _
    // Predicated region
    $region18: #{tpu_custom_call.1} parent=1 // pred_check
      _
    $region19: #{tpu_custom_call.1} parent=1 // pred_check_branch
      %51 = sbr.rel (0) target = $region21
    $region20: #{tpu_custom_call.1} parent=1 // pred_region
      %52 = dma.done [#allocation6], 256
    $region21: #{tpu_custom_call.1} parent=1 // pred_fallthru
      _
    // Predicated region
    $region22: #{tpu_custom_call.1} parent=1 // pred_check
      _
    $region23: #{tpu_custom_call.1} parent=1 // pred_check_branch
      %54 = sbr.rel (0) target = $region25
    $region24: #{tpu_custom_call.1} parent=1 // pred_region
      %55 = dma.done [#allocation6], 256
    $region25: #{tpu_custom_call.1} parent=1 // pred_fallthru
      _
    %v56 = vld [vmem:[#allocation7] sm:$0xff]
    %v57 = vld [vmem:[#allocation7 + $0x8] sm:$0xff]
    %v58 = vld [vmem:[#allocation2] sm:$0xff]
    %v59 = vld [vmem:[#allocation2 + $0x8] sm:$0xff]
    %v60 = vsub.f32 %v58, %v56
    %v61 = vsub.f32 %v59, %v57
    %v62 = vld [vmem:[#allocation5] sm:$0xff]
    %v63 = vld [vmem:[#allocation5 + $0x8] sm:$0xff]
    %v64 = vsub.f32 %v62, %v56
    %v65 = vsub.f32 %v63, %v57
    %v66 = vmul.f32 %v60, %v64
    %v67 = vmul.f32 %v61, %v65
    %v68 = vadd.f32 %v66, %v67
    %69 = vadd.xlane.f32.xlu0 %v68
    %v70 = vpop.xlane.xlu0 %69
    %v71 = vrot.slane %v70, 4
    %v72 = vadd.f32 %v70, %v71
    %v73 = vrot.slane %v72, 2
    %v74 = vadd.f32 %v72, %v73
    %v75 = vrot.slane %v74, 1
    %v76 = vadd.f32 %v74, %v75
    %s77 = vtos %v76
    %v78 = vstv %s77
    %v79 = vmul.f32 %v60, %v60
    %v80 = vmul.f32 %v61, %v61
    %v81 = vadd.f32 %v79, %v80
    %82 = vadd.xlane.f32.xlu0 %v81
    %v83 = vpop.xlane.xlu0 %82
    %v84 = vrot.slane %v83, 4
    %v85 = vadd.f32 %v83, %v84
    %v86 = vrot.slane %v85, 2
    %v87 = vadd.f32 %v85, %v86
    %v88 = vrot.slane %v87, 1
    %v89 = vadd.f32 %v87, %v88
    %s90 = vtos %v89
    %v91 = vstv %s90
    %v92 = vrcp.pop %v91
    %v93 = vmul.f32 %v78, %v92
    %vm94 = vcmask 0
    %95 = vst.msk [vmem:[#allocation8] sm:$0x1] %vm94, %v93
    // Predicated region
    $region26: #{tpu_custom_call.1} parent=1 // pred_check
      _
    $region27: #{tpu_custom_call.1} parent=1 // pred_check_branch
      %97 = sbr.rel (0) target = $region29
    $region28: #{tpu_custom_call.1} parent=1 // pred_region
      %s99 = ssub.s32 16, 16
      %100 = vsyncadd [#allocation4], %s99
      %s102 = sshll.u32 [#allocation8], 4
      %s103 = int_to_ptr.vmem [resolvable:$true] %s102
      %105 = dma.vmem_to_hbm [thread:$0]  %s103, 16, %s3, [#allocation4]
    $region29: #{tpu_custom_call.1} parent=1 // pred_fallthru
      _
    // Predicated region
    $region30: #{tpu_custom_call.1} parent=1 // pred_check
      _
    $region31: #{tpu_custom_call.1} parent=1 // pred_check_branch
      %107 = sbr.rel (0) target = $region33
    $region32: #{tpu_custom_call.1} parent=1 // pred_region
      %108 = dma.done [#allocation4], 16
    $region33: #{tpu_custom_call.1} parent=1 // pred_fallthru
      _
    %109 = vsyncpa [#allocation3], 1
    %110 = vsyncpa [#allocation6], 1
    %111 = vsyncpa [#allocation4], 1

</llo_original>
